<compile_context>
chip_gen: v6e
topology: v6e:2x2x1
jax: 0.10.0
libtpu: 0.0.40
codegen_flags: <defaults>
</compile_context>

<pallas_src>
import jax
import jax.numpy as jnp
from jax.experimental import pallas as pl
from jax.experimental.pallas import tpu as pltpu

_LANES = 128


# ---------------------------------------------------------------------------
# Packed SoA layout helpers (construction-time / boundary only, NOT hot path)
# ---------------------------------------------------------------------------
def pack_points_soa(points_aos: jax.Array) -> jax.Array:
    """(P, 4) AoS -> (4, R, 128) packed SoA, R = ceil(P/128), zero-padded tail.

    Component c, row r, lane l  <->  point r*128 + l.  Called once at
    HeliostatGroup construction so per-reflect calls do no relayout work.
    """
    P, C = points_aos.shape
    assert C == 4
    R = -(-P // _LANES)
    pad = R * _LANES - P
    x = points_aos.astype(jnp.float32)
    if pad:
        x = jnp.pad(x, ((0, pad), (0, 0)))
    return x.T.reshape(4, R, _LANES)


def unpack_points_soa(packed: jax.Array, num_points: int) -> jax.Array:
    """(4, R, 128) packed SoA -> (P, 4) AoS.  Boundary helper for consumers
    that need AoS; downstream ray tracing should consume the SoA layout."""
    return packed.reshape(4, -1).T[:num_points]


# ---------------------------------------------------------------------------
# Pallas kernel: batched ray reflection  r = i - 2 (i . n) n   (packed SoA)
# ---------------------------------------------------------------------------
def _reflect_kernel(inc_ref, n_ref, out_ref):
    # inc_ref : SMEM (4,) f32          -- incident ray components (scalar prefetch)
    # n_ref   : VMEM (4, TR, 128) f32  -- packed SoA normals block
    # out_ref : VMEM (4, TR, 128) f32  -- packed SoA reflected directions block
    ix = inc_ref[0]
    iy = inc_ref[1]
    iz = inc_ref[2]
    iw = inc_ref[3]

    nx = n_ref[0]          # (TR, 128): full (8,128)-tiled vregs, unmasked loads
    ny = n_ref[1]
    nz = n_ref[2]
    nw = n_ref[3]

    # Elementwise VPU dot product (scalar * vector), no cross-lane reduction.
    d2 = 2.0 * (ix * nx + iy * ny + iz * nz + iw * nw)   # (TR, 128)

    out_ref[0] = ix - d2 * nx
    out_ref[1] = iy - d2 * ny
    out_ref[2] = iz - d2 * nz
    out_ref[3] = iw - d2 * nw


# 4 comps * 1024 rows * 128 lanes * 4 B = 2 MiB per block; double-buffered
# in+out = 8 MiB, inside every generation's default scoped VMEM.
_TR_MAX = 1024


def _pick_tile(num_rows: int) -> int:
    if num_rows <= 8:
        return num_rows                                  # full extent, 1 block
    # >= 2 grid steps when possible (megacore on v7x); multiple of 8 for the
    # (8,128) block constraint; partial edge block is masked by Pallas.
    return min(_TR_MAX, max(num_rows // 2, 8) // 8 * 8)


def reflect_rays_soa(incident: jax.Array, normals_soa: jax.Array) -> jax.Array:
    """Reflect one incident direction off every packed surface normal.

    incident    : (4,) float32 homogeneous direction (w = 0)
    normals_soa : (4, R, 128) float32 packed SoA normals
    returns     : (4, R, 128) float32 packed SoA reflected directions
    """
    C, R, L = normals_soa.shape
    assert C == 4 and L == _LANES

    tile = _pick_tile(R)
    grid = (pl.cdiv(R, tile),)   # edge block masked; safe: purely elementwise op

    n_elem = 4 * R * _LANES
    cost = pl.CostEstimate(flops=4 * n_elem,
                           transcendentals=0,
                           bytes_accessed=2 * n_elem * 4)

    return pl.pallas_call(
        _reflect_kernel,
        out_shape=jax.ShapeDtypeStruct((4, R, _LANES), jnp.float32),
        grid_spec=pltpu.PrefetchScalarGridSpec(
            num_scalar_prefetch=1,                        # incident ray -> SMEM
            grid=grid,
            in_specs=[
                pl.BlockSpec((4, tile, _LANES), lambda i, inc: (0, i, 0)),
            ],
            out_specs=pl.BlockSpec((4, tile, _LANES), lambda i, inc: (0, i, 0)),
        ),
        compiler_params=pltpu.CompilerParams(
            dimension_semantics=("parallel",)),
        cost_estimate=cost,
    )(incident.astype(jnp.float32), normals_soa)


# ---------------------------------------------------------------------------
# Container classes mirroring the PyTorch module structure
# ---------------------------------------------------------------------------
class HeliostatGroup:
    """Stacked per-group tensors (positions, aim points, surface data)."""

    def __init__(self, names, positions, aim_points, surface_points,
                 surface_normals, initial_orientations,
                 kinematic_deviation_parameters, actuator_parameters):
        self.names = names
        self.positions = positions                              # (N, 4)
        self.aim_points = aim_points                            # (N, 4)
        self.surface_points = surface_points                    # (N, S, 4)
        self.surface_normals = surface_normals                  # (N, S, 4)
        self.initial_orientations = initial_orientations        # (N, 4)
        self.kinematic_deviation_parameters = kinematic_deviation_parameters
        self.actuator_parameters = actuator_parameters
        self.number_of_heliostats = positions.shape[0]

        # One-time SoA packing of the surface normals (hot-path layout).
        N, S, C = surface_normals.shape
        self.number_of_surface_points = N * S
        self.surface_normals_soa = pack_points_soa(
            surface_normals.reshape(N * S, C))                   # (4, R, 128)

    def reflect(self, incident_ray: jax.Array) -> jax.Array:
        """Pallas hot path: reflect the incident ray off all surface normals.

        Returns packed SoA (4, R, 128).  Use `reflect_aos` only at boundaries
        that require (N, S, 4)."""
        return reflect_rays_soa(incident_ray, self.surface_normals_soa)

    def reflect_aos(self, incident_ray: jax.Array) -> jax.Array:
        # Boundary convenience; unpack is a relayout copy, keep off hot loops.
        packed = self.reflect(incident_ray)
        N, S, C = self.surface_normals.shape
        return unpack_points_soa(packed, N * S).reshape(N, S, C)


class HeliostatField:
    """JAX/Pallas mirror of artist.field.heliostat_field.HeliostatField."""

    def __init__(self, heliostat_groups):
        self.heliostat_groups = heliostat_groups
        self.number_of_heliostat_groups = len(heliostat_groups)

    def forward(self):
        # TODO(synk): original PyTorch forward raises NotImplementedError; the
        # field-level compute lives in per-group reflection (reflect_all_groups).
        raise NotImplementedError("Not Implemented!")

    def reflect_all_groups(self, incident_ray: jax.Array):
        """One pallas_call per group (no cross-group concatenate copies)."""
        return [g.reflect(incident_ray) for g in self.heliostat_groups]


# ---------------------------------------------------------------------------
# Deterministic synthetic field construction + check
# ---------------------------------------------------------------------------
def _make_group(key, num_heliostats, points_per_heliostat):
    ks = jax.random.split(key, 6)
    positions = jnp.concatenate(
        [jax.random.normal(ks[0], (num_heliostats, 3)),
         jnp.ones((num_heliostats, 1))], axis=-1).astype(jnp.float32)
    aim_points = jnp.concatenate(
        [jax.random.normal(ks[1], (num_heliostats, 3)) * 10.0,
         jnp.ones((num_heliostats, 1))], axis=-1).astype(jnp.float32)
    surface_points = jnp.concatenate(
        [jax.random.normal(ks[2], (num_heliostats, points_per_heliostat, 3)),
         jnp.ones((num_heliostats, points_per_heliostat, 1))], axis=-1
    ).astype(jnp.float32)
    raw_n = jax.random.normal(ks[3], (num_heliostats, points_per_heliostat, 3))
    raw_n = raw_n / jnp.linalg.norm(raw_n, axis=-1, keepdims=True)
    surface_normals = jnp.concatenate(
        [raw_n, jnp.zeros((num_heliostats, points_per_heliostat, 1))], axis=-1
    ).astype(jnp.float32)
    initial_orientations = jnp.tile(
        jnp.array([0.0, 0.0, 1.0, 0.0], jnp.float32), (num_heliostats, 1))
    kinematic_deviations = jax.random.normal(ks[4], (num_heliostats, 18)).astype(jnp.float32)
    actuator_parameters = jax.random.normal(ks[5], (num_heliostats, 2, 5)).astype(jnp.float32)
    names = [f"heliostat_{i}" for i in range(num_heliostats)]
    return HeliostatGroup(
        names=names,
        positions=positions,
        aim_points=aim_points,
        surface_points=surface_points,
        surface_normals=surface_normals,
        initial_orientations=initial_orientations,
        kinematic_deviation_parameters=kinematic_deviations,
        actuator_parameters=actuator_parameters,
    )


if __name__ == "__main__":
    key = jax.random.PRNGKey(0)
    k1, k2 = jax.random.split(key)

    # Two heliostat groups (e.g. two kinematic/actuator type combinations).
    # Group A: single-block path (R = 2).  Group B: point count not a multiple
    # of 128 and R = 19 -> exercises pack padding, multi-block grid (tile=8,
    # grid=3) and the masked partial edge block.
    group_a = _make_group(k1, num_heliostats=4, points_per_heliostat=64)    # 256 pts
    group_b = _make_group(k2, num_heliostats=8, points_per_heliostat=300)   # 2400 pts
    field = HeliostatField([group_a, group_b])

    # Incident sun ray direction (homogeneous, w = 0), normalized.
    incident = jnp.array([0.0, -0.8, -0.6, 0.0], dtype=jnp.float32)

    outputs = field.reflect_all_groups(incident)
    for o in outputs:
        jax.block_until_ready(o)

    # Reference check in plain JAX (unpack only for verification).
    ok = True
    for g, packed in zip(field.heliostat_groups, outputs):
        N, S, C = g.surface_normals.shape
        out = unpack_points_soa(packed, N * S).reshape(N, S, C)
        n = g.surface_normals
        d = jnp.sum(incident[None, None, :] * n, axis=-1, keepdims=True)
        ref = incident[None, None, :] - 2.0 * d * n
        ok = ok and bool(jnp.allclose(out, ref, atol=1e-5, rtol=1e-5))

    # Also check the AoS boundary helper on the padded / partial-edge group.
    out_aos = group_b.reflect_aos(incident)
    jax.block_until_ready(out_aos)
    n = group_b.surface_normals
    d = jnp.sum(incident[None, None, :] * n, axis=-1, keepdims=True)
    ref = incident[None, None, :] - 2.0 * d * n
    ok = ok and bool(jnp.allclose(out_aos, ref, atol=1e-5, rtol=1e-5))

    if ok:
        print("KERNEL_OK")
    else:
        raise SystemExit("mismatch vs reference")
</pallas_src>

<mosaic_0001>
module attributes {stable_mosaic.version = 11 : i64} {
  func.func @_reflect_kernel(%arg0: i32, %arg1: memref<4xf32, #tpu.memory_space<smem>>, %arg2: memref<4x2x128xf32, #tpu.memory_space<vmem>>, %arg3: memref<4x2x128xf32, #tpu.memory_space<vmem>>) attributes {dimension_semantics = [#tpu.dimension_semantics<parallel>], iteration_bounds = array<i64: 1>, scalar_prefetch = 1 : i64, scratch_operands = 0 : i64, tpu.core_type = #tpu.core_type<tc>, window_params = [{transform_indices = @transform_0, window_bounds = array<i64: 4, 2, 128>}, {transform_indices = @transform_1, window_bounds = array<i64: 4, 2, 128>}]} {
    %c0 = arith.constant 0 : index
    %0 = memref.load %arg1[%c0] : memref<4xf32, #tpu.memory_space<smem>>
    %c1 = arith.constant 1 : index
    %1 = memref.load %arg1[%c1] : memref<4xf32, #tpu.memory_space<smem>>
    %c2 = arith.constant 2 : index
    %2 = memref.load %arg1[%c2] : memref<4xf32, #tpu.memory_space<smem>>
    %c3 = arith.constant 3 : index
    %3 = memref.load %arg1[%c3] : memref<4xf32, #tpu.memory_space<smem>>
    %c0_0 = arith.constant 0 : index
    %c0_1 = arith.constant 0 : index
    %c0_2 = arith.constant 0 : index
    %4 = vector.load %arg2[%c0_0, %c0_1, %c0_2] : memref<4x2x128xf32, #tpu.memory_space<vmem>>, vector<1x2x128xf32>
    %5 = vector.shape_cast %4 : vector<1x2x128xf32> to vector<2x128xf32>
    %c1_3 = arith.constant 1 : index
    %c0_4 = arith.constant 0 : index
    %c0_5 = arith.constant 0 : index
    %6 = vector.load %arg2[%c1_3, %c0_4, %c0_5] : memref<4x2x128xf32, #tpu.memory_space<vmem>>, vector<1x2x128xf32>
    %7 = vector.shape_cast %6 : vector<1x2x128xf32> to vector<2x128xf32>
    %c2_6 = arith.constant 2 : index
    %c0_7 = arith.constant 0 : index
    %c0_8 = arith.constant 0 : index
    %8 = vector.load %arg2[%c2_6, %c0_7, %c0_8] : memref<4x2x128xf32, #tpu.memory_space<vmem>>, vector<1x2x128xf32>
    %9 = vector.shape_cast %8 : vector<1x2x128xf32> to vector<2x128xf32>
    %c3_9 = arith.constant 3 : index
    %c0_10 = arith.constant 0 : index
    %c0_11 = arith.constant 0 : index
    %10 = vector.load %arg2[%c3_9, %c0_10, %c0_11] : memref<4x2x128xf32, #tpu.memory_space<vmem>>, vector<1x2x128xf32>
    %11 = vector.shape_cast %10 : vector<1x2x128xf32> to vector<2x128xf32>
    %12 = vector.broadcast %0 : f32 to vector<2x128xf32>
    %13 = arith.mulf %12, %5 : vector<2x128xf32>
    %14 = vector.broadcast %1 : f32 to vector<2x128xf32>
    %15 = arith.mulf %14, %7 : vector<2x128xf32>
    %16 = arith.addf %13, %15 : vector<2x128xf32>
    %17 = vector.broadcast %2 : f32 to vector<2x128xf32>
    %18 = arith.mulf %17, %9 : vector<2x128xf32>
    %19 = arith.addf %16, %18 : vector<2x128xf32>
    %20 = vector.broadcast %3 : f32 to vector<2x128xf32>
    %21 = arith.mulf %20, %11 : vector<2x128xf32>
    %22 = arith.addf %19, %21 : vector<2x128xf32>
    %cst = arith.constant 2.000000e+00 : f32
    %23 = vector.broadcast %cst : f32 to vector<2x128xf32>
    %24 = arith.mulf %23, %22 : vector<2x128xf32>
    %25 = arith.mulf %24, %5 : vector<2x128xf32>
    %26 = vector.broadcast %0 : f32 to vector<2x128xf32>
    %27 = arith.subf %26, %25 : vector<2x128xf32>
    %c0_12 = arith.constant 0 : index
    %c0_13 = arith.constant 0 : index
    %c0_14 = arith.constant 0 : index
    %28 = vector.load %arg3[%c0_12, %c0_13, %c0_14] : memref<4x2x128xf32, #tpu.memory_space<vmem>>, vector<1x2x128xf32>
    %29 = vector.shape_cast %28 : vector<1x2x128xf32> to vector<2x128xf32>
    %30 = vector.shape_cast %27 : vector<2x128xf32> to vector<1x2x128xf32>
    tpu.vector_store %arg3[%c0_12, %c0_13, %c0_14], %30 {strides = array<i32>} : memref<4x2x128xf32, #tpu.memory_space<vmem>>, vector<1x2x128xf32>,
    %31 = arith.mulf %24, %7 : vector<2x128xf32>
    %32 = vector.broadcast %1 : f32 to vector<2x128xf32>
    %33 = arith.subf %32, %31 : vector<2x128xf32>
    %c1_15 = arith.constant 1 : index
    %c0_16 = arith.constant 0 : index
    %c0_17 = arith.constant 0 : index
    %34 = vector.load %arg3[%c1_15, %c0_16, %c0_17] : memref<4x2x128xf32, #tpu.memory_space<vmem>>, vector<1x2x128xf32>
    %35 = vector.shape_cast %34 : vector<1x2x128xf32> to vector<2x128xf32>
    %36 = vector.shape_cast %33 : vector<2x128xf32> to vector<1x2x128xf32>
    tpu.vector_store %arg3[%c1_15, %c0_16, %c0_17], %36 {strides = array<i32>} : memref<4x2x128xf32, #tpu.memory_space<vmem>>, vector<1x2x128xf32>,
    %37 = arith.mulf %24, %9 : vector<2x128xf32>
    %38 = vector.broadcast %2 : f32 to vector<2x128xf32>
    %39 = arith.subf %38, %37 : vector<2x128xf32>
    %c2_18 = arith.constant 2 : index
    %c0_19 = arith.constant 0 : index
    %c0_20 = arith.constant 0 : index
    %40 = vector.load %arg3[%c2_18, %c0_19, %c0_20] : memref<4x2x128xf32, #tpu.memory_space<vmem>>, vector<1x2x128xf32>
    %41 = vector.shape_cast %40 : vector<1x2x128xf32> to vector<2x128xf32>
    %42 = vector.shape_cast %39 : vector<2x128xf32> to vector<1x2x128xf32>
    tpu.vector_store %arg3[%c2_18, %c0_19, %c0_20], %42 {strides = array<i32>} : memref<4x2x128xf32, #tpu.memory_space<vmem>>, vector<1x2x128xf32>,
    %43 = arith.mulf %24, %11 : vector<2x128xf32>
    %44 = vector.broadcast %3 : f32 to vector<2x128xf32>
    %45 = arith.subf %44, %43 : vector<2x128xf32>
    %c3_21 = arith.constant 3 : index
    %c0_22 = arith.constant 0 : index
    %c0_23 = arith.constant 0 : index
    %46 = vector.load %arg3[%c3_21, %c0_22, %c0_23] : memref<4x2x128xf32, #tpu.memory_space<vmem>>, vector<1x2x128xf32>
    %47 = vector.shape_cast %46 : vector<1x2x128xf32> to vector<2x128xf32>
    %48 = vector.shape_cast %45 : vector<2x128xf32> to vector<1x2x128xf32>
    tpu.vector_store %arg3[%c3_21, %c0_22, %c0_23], %48 {strides = array<i32>} : memref<4x2x128xf32, #tpu.memory_space<vmem>>, vector<1x2x128xf32>,
    return
  }
  func.func @transform_0(%arg0: i32, %arg1: memref<4xf32, #tpu.memory_space<smem>>) -> (i32, i32, i32) {
    %c0_i32 = arith.constant 0 : i32
    %c0_i32_0 = arith.constant 0 : i32
    %c0_i32_1 = arith.constant 0 : i32
    return %c0_i32, %arg0, %c0_i32_0 : i32, i32, i32
  }
  func.func @transform_1(%arg0: i32, %arg1: memref<4xf32, #tpu.memory_space<smem>>) -> (i32, i32, i32) {
    %c0_i32 = arith.constant 0 : i32
    %c0_i32_0 = arith.constant 0 : i32
    %c0_i32_1 = arith.constant 0 : i32
    return %c0_i32, %arg0, %c0_i32_0 : i32, i32, i32
  }
}

</mosaic_0001>

<llo_original>
// kernel: tpu_custom_call.1
$region0: #{tpu_custom_call.1}
  #allocation0 [shape = 'u32[]', space=smem, size = 0x4, offset = 0x4, fixed_abs, tag = 'smem constant byte address 0x4 - core index']
  #allocation1 [shape = 'u32[144,128]{1,0:T(1,128)}', space=vmem, size = 0x12000, scoped, tag = 'internal scratch']
  #allocation2 [shape = 's32[1]{0}', space=sflag, size = 0x4, scoped, tag = 'scoped memory for tpu_custom_call.1']
  #allocation3 [shape = 'u8[512]{0}', space=smem, size = 0x200, scoped, tag = 'prefetched SMEM operand 0']
  %s0 = inlined_call_operand.hbm [shape: f32[4], index: 0, kind: input, shape index: {}]
  %s1 = inlined_call_operand.hbm [shape: f32[4,2,128], index: 1, kind: input, shape index: {}]
  %s2 = inlined_call_operand.hbm [shape: f32[4,2,128], index: 2, kind: output, shape index: {}]
  %s3 = sld [smem:[#allocation0]]
  $region18: #{tpu_custom_call.1} parent=0
    _
  %s5 = ssub.s32 1, %s3
  %s6 = scalar_select 0, %s5, %s3
  %8 = dma.hbm_to_smem %s0, 16, [#allocation3], [#allocation2]
  %9 = dma.done [#allocation2], 16
  %10 = sfence
  $region1: #{tpu_custom_call.1} parent=0
    #allocation4 [shape = 'u8[4096]{0}', space=vmem, size = 0x1000, scoped, tag = 'input window, operand 1, single buffered']
    #allocation5 [shape = 's32[1]{0}', space=sflag, size = 0x4, scoped, tag = 'scoped memory for tpu_custom_call.1']
    #allocation6 [shape = 's32[1]{0}', space=sflag, size = 0x4, scoped, tag = 'scoped memory for tpu_custom_call.1']
    #allocation7 [shape = 'u8[4096]{0}', space=vmem, size = 0x1000, scoped, tag = 'output window, operand 0, single buffered']
    %11 = vsyncpa [#allocation5], 0
    %12 = vsyncpa [#allocation6], 0
    // Predicated region
    $region2: #{tpu_custom_call.1} parent=1 // pred_check
      _
    $region3: #{tpu_custom_call.1} parent=1 // pred_check_branch
      %14 = sbr.rel (0) target = $region5
    $region4: #{tpu_custom_call.1} parent=1 // pred_region
      %s16 = ssub.s32 128, 128
      %17 = vsyncadd [#allocation5], %s16
      %s18 = sshll.u32 [#allocation4], 4
      %s19 = int_to_ptr.vmem [resolvable:$true] %s18
      %24 = dma.hbm_to_vmem [thread:$0]  %s1, 128, %s19, [#allocation5], 32, 32, 2
    $region5: #{tpu_custom_call.1} parent=1 // pred_fallthru
      _
    // Predicated region
    $region6: #{tpu_custom_call.1} parent=1 // pred_check
      _
    $region7: #{tpu_custom_call.1} parent=1 // pred_check_branch
      %26 = sbr.rel (0) target = $region9
    $region8: #{tpu_custom_call.1} parent=1 // pred_region
      %27 = dma.done [#allocation5], 128
    $region9: #{tpu_custom_call.1} parent=1 // pred_fallthru
      _
    %s28 = sld [smem:[#allocation3]]
    %s29 = sld [smem:[#allocation3 + $0x1]]
    %s30 = sld [smem:[#allocation3 + $0x2]]
    %s31 = sld [smem:[#allocation3 + $0x3]]
    %v32 = vld [vmem:[#allocation4] sm:$0x3]
    %s33 = scalar_lea.vmem [#allocation4], 2
    %v34 = vld [vmem:[%s33] sm:$0x3]
    %s35 = scalar_lea.vmem [#allocation4], 4
    %v36 = vld [vmem:[%s35] sm:$0x3]
    %s37 = scalar_lea.vmem [#allocation4], 6
    %v38 = vld [vmem:[%s37] sm:$0x3]
    %v39 = vstv %s28
    %v40 = vmul.f32 %v39, %v32
    %v41 = vstv %s29
    %v42 = vmul.f32 %v41, %v34
    %v43 = vadd.f32 %v40, %v42
    %v44 = vstv %s30
    %v45 = vmul.f32 %v44, %v36
    %v46 = vadd.f32 %v43, %v45
    %v47 = vstv %s31
    %v48 = vmul.f32 %v47, %v38
    %v49 = vadd.f32 %v46, %v48
    %v50 = vmul.f32 %v49, 2.0
    %v51 = vmul.f32 %v50, %v32
    %v52 = vsub.f32 %v39, %v51
    %53 = vst [vmem:[#allocation7] sm:$0x3] %v52
    %v54 = vmul.f32 %v50, %v34
    %v55 = vsub.f32 %v41, %v54
    %s56 = scalar_lea.vmem [#allocation7], 2
    %57 = vst [vmem:[%s56] sm:$0x3] %v55
    %v58 = vmul.f32 %v50, %v36
    %v59 = vsub.f32 %v44, %v58
    %s60 = scalar_lea.vmem [#allocation7], 4
    %61 = vst [vmem:[%s60] sm:$0x3] %v59
    %v62 = vmul.f32 %v50, %v38
    %v63 = vsub.f32 %v47, %v62
    %s64 = scalar_lea.vmem [#allocation7], 6
    %65 = vst [vmem:[%s64] sm:$0x3] %v63
    // Predicated region
    $region10: #{tpu_custom_call.1} parent=1 // pred_check
      _
    $region11: #{tpu_custom_call.1} parent=1 // pred_check_branch
      %67 = sbr.rel (0) target = $region13
    $region12: #{tpu_custom_call.1} parent=1 // pred_region
      %s69 = ssub.s32 128, 128
      %70 = vsyncadd [#allocation6], %s69
      %s71 = sshll.u32 [#allocation7], 4
      %s72 = int_to_ptr.vmem [resolvable:$true] %s71
      %77 = dma.vmem_to_hbm [thread:$0]  %s72, 128, %s2, [#allocation6], 32, 32, 2
    $region13: #{tpu_custom_call.1} parent=1 // pred_fallthru
      _
    // Predicated region
    $region14: #{tpu_custom_call.1} parent=1 // pred_check
      _
    $region15: #{tpu_custom_call.1} parent=1 // pred_check_branch
      %79 = sbr.rel (0) target = $region17
    $region16: #{tpu_custom_call.1} parent=1 // pred_region
      %80 = dma.done [#allocation6], 128
    $region17: #{tpu_custom_call.1} parent=1 // pred_fallthru
      _
    %81 = vsyncpa [#allocation5], 1
    %82 = vsyncpa [#allocation6], 1

</llo_original>
